<compile_context>
chip_gen: v7x
topology: tpu7x:2x2x1
jax: 0.10.0
libtpu: 0.0.40
codegen_flags: <defaults>
</compile_context>

<pallas_src>
import jax
import jax.numpy as jnp
from jax.experimental import pallas as pl
from jax.experimental.pallas import tpu as pltpu


def _img_pos_emb_kernel(idx_ref, pos_ref, table_ref, o_ref):
    # idx_ref  : (TILE_M, 1)  int32   -- latent-pixel class ids (batch folded in)
    # pos_ref  : (TILE_M, E)           -- precomputed (height + width) pos emb
    # table_ref: (num_embed, E)        -- codebook (constant index_map -> resident)
    # o_ref    : (TILE_M, E)
    tm = idx_ref.shape[0]
    k = table_ref.shape[0]

    idx = idx_ref[...]                                               # (TILE_M, 1)
    col = jax.lax.broadcasted_iota(jnp.int32, (tm, k), 1)            # (TILE_M, K)
    onehot = (col == idx).astype(table_ref.dtype)                    # 1 VPU cmp / elem

    # One MXU matmul = the embedding gather. HIGHEST precision keeps the f32
    # table rows bit-exact (no implicit bf16 truncation).
    gathered = jnp.dot(onehot, table_ref[...],
                       preferred_element_type=jnp.float32,
                       precision=jax.lax.Precision.HIGHEST)          # (TILE_M, E) f32

    o_ref[...] = (gathered + pos_ref[...].astype(jnp.float32)).astype(o_ref.dtype)


def image_positional_embeddings_pallas(index, emb_table, height_table, width_table,
                                       height, width, *, tile_m=None):
    bs, seq = index.shape
    num_embed, E = emb_table.shape
    assert seq <= height * width, "sequence length must be <= height * width"

    # Precompute the 2D positional table once (tiny: H*W x E) and slice to seq.
    pos = (height_table[:, None, :] + width_table[None, :, :]).reshape(height * width, E)
    pos = pos[:seq]                                                  # (seq, E)

    # Fold batch into the matmul M dimension.
    M = bs * seq
    idx_flat = index.astype(jnp.int32).reshape(M)
    pos_flat = jnp.tile(pos, (bs, 1))                                # (M, E)

    if tile_m is None:
        tile_m = M if M <= 256 else 256                              # multiple of 128 when tiled

    m_pad = pl.cdiv(M, tile_m) * tile_m
    if m_pad != M:
        idx_flat = jnp.pad(idx_flat, (0, m_pad - M))                 # padded rows gather row 0
        pos_flat = jnp.pad(pos_flat, ((0, m_pad - M), (0, 0)))

    idx2 = idx_flat.reshape(m_pad, 1)                                # sublane-major ids

    out_flat = pl.pallas_call(
        _img_pos_emb_kernel,
        out_shape=jax.ShapeDtypeStruct((m_pad, E), emb_table.dtype),
        grid_spec=pltpu.PrefetchScalarGridSpec(
            num_scalar_prefetch=0,
            grid=(m_pad // tile_m,),
            in_specs=[
                pl.BlockSpec((tile_m, 1), lambda m: (m, 0)),         # class ids
                pl.BlockSpec((tile_m, E), lambda m: (m, 0)),         # pos emb slab
                pl.BlockSpec((num_embed, E), lambda m: (0, 0)),      # codebook (resident)
            ],
            out_specs=pl.BlockSpec((tile_m, E), lambda m: (m, 0)),
        ),
        compiler_params=pltpu.CompilerParams(dimension_semantics=("parallel",)),
    )(idx2, pos_flat, emb_table)

    return out_flat[:M].reshape(bs, seq, E)


def image_positional_embeddings_ref(index, emb_table, height_table, width_table,
                                    height, width):
    """Pure-JAX reference mirroring the PyTorch forward exactly."""
    emb = jnp.take(emb_table, index, axis=0)                                   # (bs, seq, E)
    h = jnp.take(height_table, jnp.arange(height), axis=0)[None, :, None, :]   # (1, H, 1, E)
    w = jnp.take(width_table, jnp.arange(width), axis=0)[None, None, :, :]     # (1, 1, W, E)
    pos = (h + w).reshape(1, height * width, -1)                               # (1, H*W, E)
    return emb + pos[:, : emb.shape[1], :]


if __name__ == "__main__":
    embed_dim = 128
    bs = 2

    key = jax.random.PRNGKey(0)
    k_e, k_h, k_w, k_i1, k_i2, k_e2, k_h2, k_w2, k_i3 = jax.random.split(key, 9)

    def run_case(k_idx, emb_table, height_table, width_table, height, width, seq):
        num_embed = emb_table.shape[0]
        index = jax.random.randint(k_idx, (bs, seq), 0, num_embed, jnp.int32)
        out = image_positional_embeddings_pallas(
            index, emb_table, height_table, width_table, height, width)
        out = jax.block_until_ready(out)
        ref = image_positional_embeddings_ref(
            index, emb_table, height_table, width_table, height, width)
        assert out.shape == (bs, seq, embed_dim), out.shape
        max_err = float(jnp.max(jnp.abs(out - ref)))
        if max_err > 1e-5:
            raise AssertionError(f"Pallas kernel mismatch (seq={seq}): max_err={max_err}")

    # Case 1 & 2: small latent image, full seq and sliced seq (pos_emb[:, :seq] path).
    num_embed, height, width = 32, 4, 4
    emb_t = jax.random.normal(k_e, (num_embed, embed_dim), jnp.float32)
    h_t = jax.random.normal(k_h, (height, embed_dim), jnp.float32)
    w_t = jax.random.normal(k_w, (width, embed_dim), jnp.float32)
    run_case(k_i1, emb_t, h_t, w_t, height, width, height * width)        # seq = 16
    run_case(k_i2, emb_t, h_t, w_t, height, width, height * width - 4)    # seq = 12

    # Case 3: larger latent image -> exercises multi-tile M grid + M padding.
    height, width = 16, 16
    emb_t2 = jax.random.normal(k_e2, (num_embed, embed_dim), jnp.float32)
    h_t2 = jax.random.normal(k_h2, (height, embed_dim), jnp.float32)
    w_t2 = jax.random.normal(k_w2, (width, embed_dim), jnp.float32)
    run_case(k_i3, emb_t2, h_t2, w_t2, height, width, 250)                # M = 500 -> 2 tiles

    print("KERNEL_OK")
</pallas_src>

<mosaic_0001>
module attributes {stable_mosaic.version = 11 : i64} {
  func.func @_img_pos_emb_kernel(%arg0: i32, %arg1: memref<32x1xi32, #tpu.memory_space<vmem>>, %arg2: memref<32x128xf32, #tpu.memory_space<vmem>>, %arg3: memref<32x128xf32, #tpu.memory_space<vmem>>, %arg4: memref<32x128xf32, #tpu.memory_space<vmem>>) attributes {dimension_semantics = [#tpu.dimension_semantics<parallel>], iteration_bounds = array<i64: 1>, scalar_prefetch = 0 : i64, scratch_operands = 0 : i64, tpu.core_type = #tpu.core_type<tc>, window_params = [{transform_indices = @transform_0, window_bounds = array<i64: 32, 1>}, {transform_indices = @transform_1, window_bounds = array<i64: 32, 128>}, {pipeline_mode = #tpu.pipeline_mode<synchronous>, transform_indices = @transform_2, window_bounds = array<i64: 32, 128>}, {transform_indices = @transform_3, window_bounds = array<i64: 32, 128>}]} {
    %c0 = arith.constant 0 : index
    %c0_0 = arith.constant 0 : index
    %0 = vector.load %arg1[%c0, %c0_0] : memref<32x1xi32, #tpu.memory_space<vmem>>, vector<32x1xi32>
    %1 = tpu.iota {dimensions = array<i32: 1>} : vector<32x32xi32>
    %2 = vector.broadcast %0 : vector<32x1xi32> to vector<32x32xi32>
    %3 = arith.cmpi eq, %1, %2 : vector<32x32xi32>
    %4 = arith.extui %3 : vector<32x32xi1> to vector<32x32xi32>
    %5 = arith.sitofp %4 : vector<32x32xi32> to vector<32x32xf32>
    %c0_1 = arith.constant 0 : index
    %c0_2 = arith.constant 0 : index
    %6 = vector.load %arg3[%c0_1, %c0_2] : memref<32x128xf32, #tpu.memory_space<vmem>>, vector<32x128xf32>
    %cst = arith.constant dense<0.000000e+00> : vector<32x128xf32>
    %7 = tpu.matmul %5, %6, %cst {dimension_numbers = #tpu.dot_dimension_numbers<[1], [0], [0], [1], [0, 0, 1, 1], [], []>, precision = #tpu.contract_precision<fp32>} : vector<32x32xf32>, vector<32x128xf32>, vector<32x128xf32> -> vector<32x128xf32>
    %c0_3 = arith.constant 0 : index
    %c0_4 = arith.constant 0 : index
    %8 = vector.load %arg2[%c0_3, %c0_4] : memref<32x128xf32, #tpu.memory_space<vmem>>, vector<32x128xf32>
    %9 = arith.addf %7, %8 : vector<32x128xf32>
    %c0_5 = arith.constant 0 : index
    %c0_6 = arith.constant 0 : index
    %10 = vector.load %arg4[%c0_5, %c0_6] : memref<32x128xf32, #tpu.memory_space<vmem>>, vector<32x128xf32>
    tpu.vector_store %arg4[%c0_5, %c0_6], %9 {strides = array<i32>} : memref<32x128xf32, #tpu.memory_space<vmem>>, vector<32x128xf32>,
    return
  }
  func.func @transform_0(%arg0: i32) -> (i32, i32) {
    %c0_i32 = arith.constant 0 : i32
    %c0_i32_0 = arith.constant 0 : i32
    return %arg0, %c0_i32 : i32, i32
  }
  func.func @transform_1(%arg0: i32) -> (i32, i32) {
    %c0_i32 = arith.constant 0 : i32
    %c0_i32_0 = arith.constant 0 : i32
    return %arg0, %c0_i32 : i32, i32
  }
  func.func @transform_2(%arg0: i32) -> (i32, i32) {
    %c0_i32 = arith.constant 0 : i32
    %c0_i32_0 = arith.constant 0 : i32
    %c0_i32_1 = arith.constant 0 : i32
    return %c0_i32, %c0_i32_0 : i32, i32
  }
  func.func @transform_3(%arg0: i32) -> (i32, i32) {
    %c0_i32 = arith.constant 0 : i32
    %c0_i32_0 = arith.constant 0 : i32
    return %arg0, %c0_i32 : i32, i32
  }
}

</mosaic_0001>

<llo_original>
// kernel: tpu_custom_call.1
$region0: #{tpu_custom_call.1}
  #allocation0 [shape = 'u32[]', space=smem, size = 0x4, offset = 0x4, fixed_abs, tag = 'smem constant byte address 0x4 - core index']
  #allocation1 [shape = 'u32[144,128]{1,0:T(1,128)}', space=vmem, size = 0x12000, scoped, tag = 'internal scratch']
  %s0 = inlined_call_operand.vmem [shape: s32[32,1], index: 0, kind: input, shape index: {}]
  %s1 = inlined_call_operand.vmem [shape: f32[32,128], index: 1, kind: input, shape index: {}]
  %s2 = inlined_call_operand.hbm [shape: f32[32,128], index: 2, kind: input, shape index: {}]
  %s3 = inlined_call_operand.hbm [shape: f32[32,128], index: 3, kind: output, shape index: {}]
  %s4 = sld [smem:[#allocation0]]
  $region26: #{tpu_custom_call.1} parent=0
    _
  %s6 = ssub.s32 1, %s4
  %s7 = scalar_select 0, %s6, %s4
  $region1: #{tpu_custom_call.1} parent=0
    #allocation2 [shape = 'u8[16384]{0}', space=vmem, size = 0x4000, scoped, tag = 'input window, operand 2, single buffered']
    #allocation3 [shape = 's32[1]{0}', space=sflag, size = 0x4, scoped, tag = 'scoped memory for tpu_custom_call.1']
    #allocation4 [shape = 's32[1]{0}', space=sflag, size = 0x4, scoped, tag = 'scoped memory for tpu_custom_call.1']
    #allocation5 [shape = 'u8[16384]{0}', space=vmem, size = 0x4000, scoped, tag = 'output window, operand 0, single buffered']
    %8 = vsyncpa [#allocation3], 0
    %9 = vsyncpa [#allocation4], 0
    // Predicated region
    $region2: #{tpu_custom_call.1} parent=1 // pred_check
      _
    $region3: #{tpu_custom_call.1} parent=1 // pred_check_branch
      %11 = sbr.rel (0) target = $region5
    $region4: #{tpu_custom_call.1} parent=1 // pred_region
      _
    $region5: #{tpu_custom_call.1} parent=1 // pred_fallthru
      _
    // Predicated region
    $region6: #{tpu_custom_call.1} parent=1 // pred_check
      _
    $region7: #{tpu_custom_call.1} parent=1 // pred_check_branch
      %13 = sbr.rel (0) target = $region9
    $region8: #{tpu_custom_call.1} parent=1 // pred_region
      _
    $region9: #{tpu_custom_call.1} parent=1 // pred_fallthru
      _
    // Predicated region
    $region10: #{tpu_custom_call.1} parent=1 // pred_check
      _
    $region11: #{tpu_custom_call.1} parent=1 // pred_check_branch
      %15 = sbr.rel (0) target = $region13
    $region12: #{tpu_custom_call.1} parent=1 // pred_region
      %s17 = ssub.s32 512, 512
      %18 = vsyncadd [#allocation3], %s17
      %s19 = sshll.u32 [#allocation2], 4
      %s20 = int_to_ptr.vmem [resolvable:$true] %s19
      %25 = dma.hbm_to_vmem [thread:$0]  %s2, 512, %s20, [#allocation3], 128, 128, 8
    $region13: #{tpu_custom_call.1} parent=1 // pred_fallthru
      _
    // Predicated region
    $region14: #{tpu_custom_call.1} parent=1 // pred_check
      _
    $region15: #{tpu_custom_call.1} parent=1 // pred_check_branch
      %27 = sbr.rel (0) target = $region17
    $region16: #{tpu_custom_call.1} parent=1 // pred_region
      %28 = dma.done [#allocation3], 512
    $region17: #{tpu_custom_call.1} parent=1 // pred_fallthru
      _
    %v29 = vld [vmem:[%s0] sm:$0xff]
    %v30 = vld [vmem:[%s0 + $0x8] sm:$0xff]
    %v31 = vld [vmem:[%s0 + $0x10] sm:$0xff]
    %v32 = vld [vmem:[%s0 + $0x18] sm:$0xff]
    %v33 = vlaneseq
    %v34 = vand.u32 %v33, 127
    %35 = vset.pattern.permute.xlu0 0
    %36 = vperm.xlu0 %35, %v29
    %v37 = vpop.permute.xlu0 %36
    %38 = vset.pattern.permute.xlu0 0
    %39 = vperm.xlu0 %38, %v30
    %v40 = vpop.permute.xlu0 %39
    %41 = vset.pattern.permute.xlu0 0
    %42 = vperm.xlu0 %41, %v31
    %v43 = vpop.permute.xlu0 %42
    %44 = vset.pattern.permute.xlu0 0
    %45 = vperm.xlu0 %44, %v32
    %v46 = vpop.permute.xlu0 %45
    %vm47 = vcmp.eq.s32.totalorder %v34, %v37
    %vm48 = vcmp.eq.s32.totalorder %v34, %v40
    %vm49 = vcmp.eq.s32.totalorder %v34, %v43
    %vm50 = vcmp.eq.s32.totalorder %v34, %v46
    %v51 = vsel %vm47, 1, 0
    %v52 = vsel %vm48, 1, 0
    %v53 = vsel %vm49, 1, 0
    %v54 = vsel %vm50, 1, 0
    %v55 = vcvt.s32.f32 %v51
    %v56 = vcvt.s32.f32 %v52
    %v57 = vcvt.s32.f32 %v53
    %v58 = vcvt.s32.f32 %v54
    %v59 = vld [vmem:[#allocation2] sm:$0xff]
    %v60 = vld [vmem:[#allocation2 + $0x8] sm:$0xff]
    %v61 = vld [vmem:[#allocation2 + $0x10] sm:$0xff]
    %v62 = vld [vmem:[#allocation2 + $0x18] sm:$0xff]
    %v63 = vld [vmem:[%s1] sm:$0xff]
    %v64 = vld [vmem:[%s1 + $0x8] sm:$0xff]
    %v65 = vld [vmem:[%s1 + $0x10] sm:$0xff]
    %v66 = vld [vmem:[%s1 + $0x18] sm:$0xff]
    %vm67 = vcmask 261120
    %v69 = vsel %vm67, %v55, 0
    %v72 = vsel %vm67, %v56, 0
    %v75 = vsel %vm67, %v57, 0
    %v78 = vsel %vm67, %v58, 0
    %80 = vmatprep.subr.mxu0 0.0
    %v81 = vand.u32 %v59, 4294901760
    %82 = vmatpush1.msra.mxu0 %v81
    %83 = vmatprep.subr.mxu0 0.0
    %v84 = vand.u32 %v60, 4294901760
    %85 = vmatpush1.msra.mxu0 %v84
    %86 = vmatprep.subr.mxu0 0.0
    %v87 = vand.u32 %v61, 4294901760
    %88 = vmatpush1.msra.mxu0 %v87
    %89 = vmatprep.subr.mxu0 0.0
    %v90 = vand.u32 %v62, 4294901760
    %91 = vmatpush1.msra.mxu0 %v90
    %92 = vmatprep.subr.mxu0 0.0
    %93 = vmatpush1.msra.mxu0 0.0
    %94 = vmatprep.subr.mxu0 0.0
    %95 = vmatpush1.msra.mxu0 0.0
    %96 = vmatprep.subr.mxu0 0.0
    %97 = vmatpush1.msra.mxu0 0.0
    %98 = vmatprep.subr.mxu0 0.0
    %99 = vmatpush1.msra.mxu0 0.0
    %100 = vmatprep.subr.mxu0 0.0
    %101 = vmatpush1.msra.mxu0 0.0
    %102 = vmatprep.subr.mxu0 0.0
    %103 = vmatpush1.msra.mxu0 0.0
    %104 = vmatprep.subr.mxu0 0.0
    %105 = vmatpush1.msra.mxu0 0.0
    %106 = vmatprep.subr.mxu0 0.0
    %107 = vmatpush1.msra.mxu0 0.0
    %108 = vmatprep.subr.mxu0 0.0
    %109 = vmatpush1.msra.mxu0 0.0
    %110 = vmatprep.subr.mxu0 0.0
    %111 = vmatpush1.msra.mxu0 0.0
    %112 = vmatprep.subr.mxu0 0.0
    %113 = vmatpush1.msra.mxu0 0.0
    %114 = vmatprep.subr.mxu0 0.0
    %115 = vmatpush1.msra.mxu0 0.0
    %116 = vmatprep.subr.mxu0 0.0
    %117 = vmatpush1.msra.mxu0 0.0
    %118 = vmatprep.subr.mxu0 0.0
    %119 = vmatpush1.msra.mxu0 0.0
    %120 = vmatprep.subr.mxu0 0.0
    %121 = vmatpush1.msra.mxu0 0.0
    %122 = vmatprep.subr.mxu0 0.0
    %123 = vmatpush1.msra.mxu0 0.0
    %124 = vmatprep.subr.mxu0 0.0
    %125 = vmatpush1.msra.mxu0 0.0
    %126 = vmatprep.subr.mxu0 0.0
    %127 = vmatpush1.msra.mxu0 0.0
    %128 = vmatprep.subr.mxu0 0.0
    %129 = vmatpush1.msra.mxu0 0.0
    %130 = vmatprep.subr.mxu0 0.0
    %131 = vmatpush1.msra.mxu0 0.0
    %132 = vmatprep.subr.mxu0 0.0
    %133 = vmatpush1.msra.mxu0 0.0
    %134 = vmatprep.subr.mxu0 0.0
    %135 = vmatpush1.msra.mxu0 0.0
    %136 = vmatprep.subr.mxu0 0.0
    %137 = vmatpush1.msra.mxu0 0.0
    %138 = vmatprep.subr.mxu0 0.0
    %139 = vmatpush1.msra.mxu0 0.0
    %140 = vmatprep.subr.mxu0 0.0
    %141 = vmatpush1.msra.mxu0 0.0
    %142 = vmatprep.subr.mxu0 0.0
    %143 = vmatpush1.msra.mxu0 0.0
    %144 = vmatprep.subr.mxu0 0.0
    %145 = vmatpush1.msra.mxu0 0.0
    %146 = vmatprep.subr.mxu0 0.0
    %147 = vmatpush1.msra.mxu0 0.0
    %148 = vmatprep.mubr.f32.mxu0 0.0
    %v149 = vand.u32 %v69, 4294901760
    %v150 = vsub.f32 %v69, %v149
    %v151 = vand.u32 %v150, 4294901760
    %v152 = vsub.f32 %v150, %v151
    %v153 = vand.u32 %v152, 4294901760
    %154 = vmatmul.mubr.f32.gmra.mrb[0].mxu0 %v153
    %v155 = vpop.f32.mrb[0].mxu0
    %v156 = vadd.f32 %v63, %v155
    %v157 = vpop.f32.mrb[0].mxu0
    %158 = vmatprep.mubr.f32.mxu0 0.0
    %v159 = vand.u32 %v72, 4294901760
    %v160 = vsub.f32 %v72, %v159
    %v161 = vand.u32 %v160, 4294901760
    %v162 = vsub.f32 %v160, %v161
    %v163 = vand.u32 %v162, 4294901760
    %164 = vmatmul.mubr.f32.gmra.mrb[0].mxu0 %v163
    %v165 = vpop.f32.mrb[0].mxu0
    %v166 = vadd.f32 %v64, %v165
    %v167 = vpop.f32.mrb[0].mxu0
    %168 = vmatprep.mubr.f32.mxu0 0.0
    %v169 = vand.u32 %v75, 4294901760
    %v170 = vsub.f32 %v75, %v169
    %v171 = vand.u32 %v170, 4294901760
    %v172 = vsub.f32 %v170, %v171
    %v173 = vand.u32 %v172, 4294901760
    %174 = vmatmul.mubr.f32.gmra.mrb[0].mxu0 %v173
    %v175 = vpop.f32.mrb[0].mxu0
    %v176 = vadd.f32 %v65, %v175
    %v177 = vpop.f32.mrb[0].mxu0
    %178 = vmatprep.mubr.f32.mxu0 0.0
    %v179 = vand.u32 %v78, 4294901760
    %v180 = vsub.f32 %v78, %v179
    %v181 = vand.u32 %v180, 4294901760
    %v182 = vsub.f32 %v180, %v181
    %v183 = vand.u32 %v182, 4294901760
    %184 = vmatmul.mubr.f32.gmra.mrb[0].mxu0 %v183
    %v185 = vpop.f32.mrb[0].mxu0
    %v186 = vadd.f32 %v66, %v185
    %v187 = vpop.f32.mrb[0].mxu0
    %188 = vdwg.mxu0
    %189 = vmatprep.subr.mxu0 0.0
    %v190 = vand.u32 %v59, 4294901760
    %v191 = vsub.f32 %v59, %v190
    %v192 = vand.u32 %v191, 4294901760
    %v193 = vsub.f32 %v191, %v192
    %v194 = vand.u32 %v193, 4294901760
    %195 = vmatpush1.msra.mxu0 %v194
    %196 = vmatprep.subr.mxu0 0.0
    %v197 = vand.u32 %v60, 4294901760
    %v198 = vsub.f32 %v60, %v197
    %v199 = vand.u32 %v198, 4294901760
    %v200 = vsub.f32 %v198, %v199
    %v201 = vand.u32 %v200, 4294901760
    %202 = vmatpush1.msra.mxu0 %v201
    %203 = vmatprep.subr.mxu0 0.0
    %v204 = vand.u32 %v61, 4294901760
    %v205 = vsub.f32 %v61, %v204
    %v206 = vand.u32 %v205, 4294901760
    %v207 = vsub.f32 %v205, %v206
    %v208 = vand.u32 %v207, 4294901760
    %209 = vmatpush1.msra.mxu0 %v208
    %210 = vmatprep.subr.mxu0 0.0
    %v211 = vand.u32 %v62, 4294901760
    %v212 = vsub.f32 %v62, %v211
    %v213 = vand.u32 %v212, 4294901760
    %v214 = vsub.f32 %v212, %v213
    %v215 = vand.u32 %v214, 4294901760
    %216 = vmatpush1.msra.mxu0 %v215
    %217 = vmatprep.subr.mxu0 0.0
    %218 = vmatpush1.msra.mxu0 0.0
    %219 = vmatprep.subr.mxu0 0.0
    %220 = vmatpush1.msra.mxu0 0.0
    %221 = vmatprep.subr.mxu0 0.0
    %222 = vmatpush1.msra.mxu0 0.0
    %223 = vmatprep.subr.mxu0 0.0
    %224 = vmatpush1.msra.mxu0 0.0
    %225 = vmatprep.subr.mxu0 0.0
    %226 = vmatpush1.msra.mxu0 0.0
    %227 = vmatprep.subr.mxu0 0.0
    %228 = vmatpush1.msra.mxu0 0.0
    %229 = vmatprep.subr.mxu0 0.0
    %230 = vmatpush1.msra.mxu0 0.0
    %231 = vmatprep.subr.mxu0 0.0
    %232 = vmatpush1.msra.mxu0 0.0
    %233 = vmatprep.subr.mxu0 0.0
    %234 = vmatpush1.msra.mxu0 0.0
    %235 = vmatprep.subr.mxu0 0.0
    %236 = vmatpush1.msra.mxu0 0.0
    %237 = vmatprep.subr.mxu0 0.0
    %238 = vmatpush1.msra.mxu0 0.0
    %239 = vmatprep.subr.mxu0 0.0
    %240 = vmatpush1.msra.mxu0 0.0
    %241 = vmatprep.subr.mxu0 0.0
    %242 = vmatpush1.msra.mxu0 0.0
    %243 = vmatprep.subr.mxu0 0.0
    %244 = vmatpush1.msra.mxu0 0.0
    %245 = vmatprep.subr.mxu0 0.0
    %246 = vmatpush1.msra.mxu0 0.0
    %247 = vmatprep.subr.mxu0 0.0
    %248 = vmatpush1.msra.mxu0 0.0
    %249 = vmatprep.subr.mxu0 0.0
    %250 = vmatpush1.msra.mxu0 0.0
    %251 = vmatprep.subr.mxu0 0.0
    %252 = vmatpush1.msra.mxu0 0.0
    %253 = vmatprep.subr.mxu0 0.0
    %254 = vmatpush1.msra.mxu0 0.0
    %255 = vmatprep.subr.mxu0 0.0
    %256 = vmatpush1.msra.mxu0 0.0
    %257 = vmatprep.subr.mxu0 0.0
    %258 = vmatpush1.msra.mxu0 0.0
    %259 = vmatprep.subr.mxu0 0.0
    %260 = vmatpush1.msra.mxu0 0.0
    %261 = vmatprep.subr.mxu0 0.0
    %262 = vmatpush1.msra.mxu0 0.0
    %263 = vmatprep.subr.mxu0 0.0
    %264 = vmatpush1.msra.mxu0 0.0
    %265 = vmatprep.subr.mxu0 0.0
    %266 = vmatpush1.msra.mxu0 0.0
    %267 = vmatprep.subr.mxu0 0.0
    %268 = vmatpush1.msra.mxu0 0.0
    %269 = vmatprep.subr.mxu0 0.0
    %270 = vmatpush1.msra.mxu0 0.0
    %271 = vmatprep.subr.mxu0 0.0
    %272 = vmatpush1.msra.mxu0 0.0
    %273 = vmatprep.mubr.f32.mxu0 0.0
    %v274 = vand.u32 %v69, 4294901760
    %275 = vmatmul.mubr.f32.gmra.mrb[0].mxu0 %v274
    %v276 = vpop.f32.mrb[0].mxu0
    %v277 = vadd.f32 %v156, %v276
    %v278 = vpop.f32.mrb[0].mxu0
    %279 = vmatprep.mubr.f32.mxu0 0.0
    %v280 = vand.u32 %v72, 4294901760
    %281 = vmatmul.mubr.f32.gmra.mrb[0].mxu0 %v280
    %v282 = vpop.f32.mrb[0].mxu0
    %v283 = vadd.f32 %v166, %v282
    %v284 = vpop.f32.mrb[0].mxu0
    %285 = vmatprep.mubr.f32.mxu0 0.0
    %v286 = vand.u32 %v75, 4294901760
    %287 = vmatmul.mubr.f32.gmra.mrb[0].mxu0 %v286
    %v288 = vpop.f32.mrb[0].mxu0
    %v289 = vadd.f32 %v176, %v288
    %v290 = vpop.f32.mrb[0].mxu0
    %291 = vmatprep.mubr.f32.mxu0 0.0
    %v292 = vand.u32 %v78, 4294901760
    %293 = vmatmul.mubr.f32.gmra.mrb[0].mxu0 %v292
    %v294 = vpop.f32.mrb[0].mxu0
    %v295 = vadd.f32 %v186, %v294
    %v296 = vpop.f32.mrb[0].mxu0
    %297 = vdwg.mxu0
    %298 = vmatprep.subr.mxu0 0.0
    %v299 = vand.u32 %v59, 4294901760
    %v300 = vsub.f32 %v59, %v299
    %301 = vmatpush1.msra.mxu0 %v300
    %302 = vmatprep.subr.mxu0 0.0
    %v303 = vand.u32 %v60, 4294901760
    %v304 = vsub.f32 %v60, %v303
    %305 = vmatpush1.msra.mxu0 %v304
    %306 = vmatprep.subr.mxu0 0.0
    %v307 = vand.u32 %v61, 4294901760
    %v308 = vsub.f32 %v61, %v307
    %309 = vmatpush1.msra.mxu0 %v308
    %310 = vmatprep.subr.mxu0 0.0
    %v311 = vand.u32 %v62, 4294901760
    %v312 = vsub.f32 %v62, %v311
    %313 = vmatpush1.msra.mxu0 %v312
    %314 = vmatprep.subr.mxu0 0.0
    %315 = vmatpush1.msra.mxu0 0.0
    %316 = vmatprep.subr.mxu0 0.0
    %317 = vmatpush1.msra.mxu0 0.0
    %318 = vmatprep.subr.mxu0 0.0
    %319 = vmatpush1.msra.mxu0 0.0
    %320 = vmatprep.subr.mxu0 0.0
    %321 = vmatpush1.msra.mxu0 0.0
    %322 = vmatprep.subr.mxu0 0.0
    %323 = vmatpush1.msra.mxu0 0.0
    %324 = vmatprep.subr.mxu0 0.0
    %325 = vmatpush1.msra.mxu0 0.0
    %326 = vmatprep.subr.mxu0 0.0
    %327 = vmatpush1.msra.mxu0 0.0
    %328 = vmatprep.subr.mxu0 0.0
    %329 = vmatpush1.msra.mxu0 0.0
    %330 = vmatprep.subr.mxu0 0.0
    %331 = vmatpush1.msra.mxu0 0.0
    %332 = vmatprep.subr.mxu0 0.0
    %333 = vmatpush1.msra.mxu0 0.0
    %334 = vmatprep.subr.mxu0 0.0
    %335 = vmatpush1.msra.mxu0 0.0
    %336 = vmatprep.subr.mxu0 0.0
    %337 = vmatpush1.msra.mxu0 0.0
    %338 = vmatprep.subr.mxu0 0.0
    %339 = vmatpush1.msra.mxu0 0.0
    %340 = vmatprep.subr.mxu0 0.0
    %341 = vmatpush1.msra.mxu0 0.0
    %342 = vmatprep.subr.mxu0 0.0
    %343 = vmatpush1.msra.mxu0 0.0
    %344 = vmatprep.subr.mxu0 0.0
    %345 = vmatpush1.msra.mxu0 0.0
    %346 = vmatprep.subr.mxu0 0.0
    %347 = vmatpush1.msra.mxu0 0.0
    %348 = vmatprep.subr.mxu0 0.0
    %349 = vmatpush1.msra.mxu0 0.0
    %350 = vmatprep.subr.mxu0 0.0
    %351 = vmatpush1.msra.mxu0 0.0
    %352 = vmatprep.subr.mxu0 0.0
    %353 = vmatpush1.msra.mxu0 0.0
    %354 = vmatprep.subr.mxu0 0.0
    %355 = vmatpush1.msra.mxu0 0.0
    %356 = vmatprep.subr.mxu0 0.0
    %357 = vmatpush1.msra.mxu0 0.0
    %358 = vmatprep.subr.mxu0 0.0
    %359 = vmatpush1.msra.mxu0 0.0
    %360 = vmatprep.subr.mxu0 0.0
    %361 = vmatpush1.msra.mxu0 0.0
    %362 = vmatprep.subr.mxu0 0.0
    %363 = vmatpush1.msra.mxu0 0.0
    %364 = vmatprep.subr.mxu0 0.0
    %365 = vmatpush1.msra.mxu0 0.0
    %366 = vmatprep.subr.mxu0 0.0
    %367 = vmatpush1.msra.mxu0 0.0
    %368 = vmatprep.subr.mxu0 0.0
    %369 = vmatpush1.msra.mxu0 0.0
    %370 = vmatprep.mubr.f32.mxu0 0.0
    %v371 = vand.u32 %v69, 4294901760
    %v372 = vsub.f32 %v69, %v371
    %373 = vmatmul.mubr.f32.gmra.mrb[0].mxu0 %v372
    %v374 = vpop.f32.mrb[0].mxu0
    %v375 = vadd.f32 %v277, %v374
    %v376 = vpop.f32.mrb[0].mxu0
    %377 = vmatprep.mubr.f32.mxu0 0.0
    %v378 = vand.u32 %v72, 4294901760
    %v379 = vsub.f32 %v72, %v378
    %380 = vmatmul.mubr.f32.gmra.mrb[0].mxu0 %v379
    %v381 = vpop.f32.mrb[0].mxu0
    %v382 = vadd.f32 %v283, %v381
    %v383 = vpop.f32.mrb[0].mxu0
    %384 = vmatprep.mubr.f32.mxu0 0.0
    %v385 = vand.u32 %v75, 4294901760
    %v386 = vsub.f32 %v75, %v385
    %387 = vmatmul.mubr.f32.gmra.mrb[0].mxu0 %v386
    %v388 = vpop.f32.mrb[0].mxu0
    %v389 = vadd.f32 %v289, %v388
    %v390 = vpop.f32.mrb[0].mxu0
    %391 = vmatprep.mubr.f32.mxu0 0.0
    %v392 = vand.u32 %v78, 4294901760
    %v393 = vsub.f32 %v78, %v392
    %394 = vmatmul.mubr.f32.gmra.mrb[0].mxu0 %v393
    %v395 = vpop.f32.mrb[0].mxu0
    %v396 = vadd.f32 %v295, %v395
    %v397 = vpop.f32.mrb[0].mxu0
    %398 = vdwg.mxu0
    %399 = vmatprep.subr.mxu0 0.0
    %v400 = vand.u32 %v59, 4294901760
    %401 = vmatpush1.msra.mxu0 %v400
    %402 = vmatprep.subr.mxu0 0.0
    %v403 = vand.u32 %v60, 4294901760
    %404 = vmatpush1.msra.mxu0 %v403
    %405 = vmatprep.subr.mxu0 0.0
    %v406 = vand.u32 %v61, 4294901760
    %407 = vmatpush1.msra.mxu0 %v406
    %408 = vmatprep.subr.mxu0 0.0
    %v409 = vand.u32 %v62, 4294901760
    %410 = vmatpush1.msra.mxu0 %v409
    %411 = vmatprep.subr.mxu0 0.0
    %412 = vmatpush1.msra.mxu0 0.0
    %413 = vmatprep.subr.mxu0 0.0
    %414 = vmatpush1.msra.mxu0 0.0
    %415 = vmatprep.subr.mxu0 0.0
    %416 = vmatpush1.msra.mxu0 0.0
    %417 = vmatprep.subr.mxu0 0.0
    %418 = vmatpush1.msra.mxu0 0.0
    %419 = vmatprep.subr.mxu0 0.0
    %420 = vmatpush1.msra.mxu0 0.0
    %421 = vmatprep.subr.mxu0 0.0
    %422 = vmatpush1.msra.mxu0 0.0
    %423 = vmatprep.subr.mxu0 0.0
    %424 = vmatpush1.msra.mxu0 0.0
    %425 = vmatprep.subr.mxu0 0.0
    %426 = vmatpush1.msra.mxu0 0.0
    %427 = vmatprep.subr.mxu0 0.0
    %428 = vmatpush1.msra.mxu0 0.0
    %429 = vmatprep.subr.mxu0 0.0
    %430 = vmatpush1.msra.mxu0 0.0
    %431 = vmatprep.subr.mxu0 0.0
    %432 = vmatpush1.msra.mxu0 0.0
    %433 = vmatprep.subr.mxu0 0.0
    %434 = vmatpush1.msra.mxu0 0.0
    %435 = vmatprep.subr.mxu0 0.0
    %436 = vmatpush1.msra.mxu0 0.0
    %437 = vmatprep.subr.mxu0 0.0
    %438 = vmatpush1.msra.mxu0 0.0
    %439 = vmatprep.subr.mxu0 0.0
    %440 = vmatpush1.msra.mxu0 0.0
    %441 = vmatprep.subr.mxu0 0.0
    %442 = vmatpush1.msra.mxu0 0.0
    %443 = vmatprep.subr.mxu0 0.0
    %444 = vmatpush1.msra.mxu0 0.0
    %445 = vmatprep.subr.mxu0 0.0
    %446 = vmatpush1.msra.mxu0 0.0
    %447 = vmatprep.subr.mxu0 0.0
    %448 = vmatpush1.msra.mxu0 0.0
    %449 = vmatprep.subr.mxu0 0.0
    %450 = vmatpush1.msra.mxu0 0.0
    %451 = vmatprep.subr.mxu0 0.0
    %452 = vmatpush1.msra.mxu0 0.0
    %453 = vmatprep.subr.mxu0 0.0
    %454 = vmatpush1.msra.mxu0 0.0
    %455 = vmatprep.subr.mxu0 0.0
    %456 = vmatpush1.msra.mxu0 0.0
    %457 = vmatprep.subr.mxu0 0.0
    %458 = vmatpush1.msra.mxu0 0.0
    %459 = vmatprep.subr.mxu0 0.0
    %460 = vmatpush1.msra.mxu0 0.0
    %461 = vmatprep.subr.mxu0 0.0
    %462 = vmatpush1.msra.mxu0 0.0
    %463 = vmatprep.subr.mxu0 0.0
    %464 = vmatpush1.msra.mxu0 0.0
    %465 = vmatprep.subr.mxu0 0.0
    %466 = vmatpush1.msra.mxu0 0.0
    %467 = vmatprep.mubr.f32.mxu0 0.0
    %v468 = vand.u32 %v69, 4294901760
    %v469 = vsub.f32 %v69, %v468
    %v470 = vand.u32 %v469, 4294901760
    %471 = vmatmul.mubr.f32.gmra.mrb[0].mxu0 %v470
    %v472 = vpop.f32.mrb[0].mxu0
    %v473 = vadd.f32 %v375, %v472
    %v474 = vpop.f32.mrb[0].mxu0
    %475 = vmatprep.mubr.f32.mxu0 0.0
    %v476 = vand.u32 %v72, 4294901760
    %v477 = vsub.f32 %v72, %v476
    %v478 = vand.u32 %v477, 4294901760
    %479 = vmatmul.mubr.f32.gmra.mrb[0].mxu0 %v478
    %v480 = vpop.f32.mrb[0].mxu0
    %v481 = vadd.f32 %v382, %v480
    %v482 = vpop.f32.mrb[0].mxu0
    %483 = vmatprep.mubr.f32.mxu0 0.0
    %v484 = vand.u32 %v75, 4294901760
    %v485 = vsub.f32 %v75, %v484
    %v486 = vand.u32 %v485, 4294901760
    %487 = vmatmul.mubr.f32.gmra.mrb[0].mxu0 %v486
    %v488 = vpop.f32.mrb[0].mxu0
    %v489 = vadd.f32 %v389, %v488
    %v490 = vpop.f32.mrb[0].mxu0
    %491 = vmatprep.mubr.f32.mxu0 0.0
    %v492 = vand.u32 %v78, 4294901760
    %v493 = vsub.f32 %v78, %v492
    %v494 = vand.u32 %v493, 4294901760
    %495 = vmatmul.mubr.f32.gmra.mrb[0].mxu0 %v494
    %v496 = vpop.f32.mrb[0].mxu0
    %v497 = vadd.f32 %v396, %v496
    %v498 = vpop.f32.mrb[0].mxu0
    %499 = vdwg.mxu0
    %500 = vmatprep.subr.mxu0 0.0
    %v501 = vand.u32 %v59, 4294901760
    %v502 = vsub.f32 %v59, %v501
    %v503 = vand.u32 %v502, 4294901760
    %504 = vmatpush1.msra.mxu0 %v503
    %505 = vmatprep.subr.mxu0 0.0
    %v506 = vand.u32 %v60, 4294901760
    %v507 = vsub.f32 %v60, %v506
    %v508 = vand.u32 %v507, 4294901760
    %509 = vmatpush1.msra.mxu0 %v508
    %510 = vmatprep.subr.mxu0 0.0
    %v511 = vand.u32 %v61, 4294901760
    %v512 = vsub.f32 %v61, %v511
    %v513 = vand.u32 %v512, 4294901760
    %514 = vmatpush1.msra.mxu0 %v513
    %515 = vmatprep.subr.mxu0 0.0
    %v516 = vand.u32 %v62, 4294901760
    %v517 = vsub.f32 %v62, %v516
    %v518 = vand.u32 %v517, 4294901760
    %519 = vmatpush1.msra.mxu0 %v518
    %520 = vmatprep.subr.mxu0 0.0
    %521 = vmatpush1.msra.mxu0 0.0
    %522 = vmatprep.subr.mxu0 0.0
    %523 = vmatpush1.msra.mxu0 0.0
    %524 = vmatprep.subr.mxu0 0.0
    %525 = vmatpush1.msra.mxu0 0.0
    %526 = vmatprep.subr.mxu0 0.0
    %527 = vmatpush1.msra.mxu0 0.0
    %528 = vmatprep.subr.mxu0 0.0
    %529 = vmatpush1.msra.mxu0 0.0
    %530 = vmatprep.subr.mxu0 0.0
    %531 = vmatpush1.msra.mxu0 0.0
    %532 = vmatprep.subr.mxu0 0.0
    %533 = vmatpush1.msra.mxu0 0.0
    %534 = vmatprep.subr.mxu0 0.0
    %535 = vmatpush1.msra.mxu0 0.0
    %536 = vmatprep.subr.mxu0 0.0
    %537 = vmatpush1.msra.mxu0 0.0
    %538 = vmatprep.subr.mxu0 0.0
    %539 = vmatpush1.msra.mxu0 0.0
    %540 = vmatprep.subr.mxu0 0.0
    %541 = vmatpush1.msra.mxu0 0.0
    %542 = vmatprep.subr.mxu0 0.0
    %543 = vmatpush1.msra.mxu0 0.0
    %544 = vmatprep.subr.mxu0 0.0
    %545 = vmatpush1.msra.mxu0 0.0
    %546 = vmatprep.subr.mxu0 0.0
    %547 = vmatpush1.msra.mxu0 0.0
    %548 = vmatprep.subr.mxu0 0.0
    %549 = vmatpush1.msra.mxu0 0.0
    %550 = vmatprep.subr.mxu0 0.0
    %551 = vmatpush1.msra.mxu0 0.0
    %552 = vmatprep.subr.mxu0 0.0
    %553 = vmatpush1.msra.mxu0 0.0
    %554 = vmatprep.subr.mxu0 0.0
    %555 = vmatpush1.msra.mxu0 0.0
    %556 = vmatprep.subr.mxu0 0.0
    %557 = vmatpush1.msra.mxu0 0.0
    %558 = vmatprep.subr.mxu0 0.0
    %559 = vmatpush1.msra.mxu0 0.0
    %560 = vmatprep.subr.mxu0 0.0
    %561 = vmatpush1.msra.mxu0 0.0
    %562 = vmatprep.subr.mxu0 0.0
    %563 = vmatpush1.msra.mxu0 0.0
    %564 = vmatprep.subr.mxu0 0.0
    %565 = vmatpush1.msra.mxu0 0.0
    %566 = vmatprep.subr.mxu0 0.0
    %567 = vmatpush1.msra.mxu0 0.0
    %568 = vmatprep.subr.mxu0 0.0
    %569 = vmatpush1.msra.mxu0 0.0
    %570 = vmatprep.subr.mxu0 0.0
    %571 = vmatpush1.msra.mxu0 0.0
    %572 = vmatprep.subr.mxu0 0.0
    %573 = vmatpush1.msra.mxu0 0.0
    %574 = vmatprep.subr.mxu0 0.0
    %575 = vmatpush1.msra.mxu0 0.0
    %576 = vmatprep.mubr.f32.mxu0 0.0
    %v577 = vand.u32 %v69, 4294901760
    %578 = vmatmul.mubr.f32.gmra.mrb[0].mxu0 %v577
    %v579 = vpop.f32.mrb[0].mxu0
    %v580 = vadd.f32 %v473, %v579
    %v581 = vpop.f32.mrb[0].mxu0
    %582 = vmatprep.mubr.f32.mxu0 0.0
    %v583 = vand.u32 %v72, 4294901760
    %584 = vmatmul.mubr.f32.gmra.mrb[0].mxu0 %v583
    %v585 = vpop.f32.mrb[0].mxu0
    %v586 = vadd.f32 %v481, %v585
    %v587 = vpop.f32.mrb[0].mxu0
    %588 = vmatprep.mubr.f32.mxu0 0.0
    %v589 = vand.u32 %v75, 4294901760
    %590 = vmatmul.mubr.f32.gmra.mrb[0].mxu0 %v589
    %v591 = vpop.f32.mrb[0].mxu0
    %v592 = vadd.f32 %v489, %v591
    %v593 = vpop.f32.mrb[0].mxu0
    %594 = vmatprep.mubr.f32.mxu0 0.0
    %v595 = vand.u32 %v78, 4294901760
    %596 = vmatmul.mubr.f32.gmra.mrb[0].mxu0 %v595
    %v597 = vpop.f32.mrb[0].mxu0
    %v598 = vadd.f32 %v497, %v597
    %v599 = vpop.f32.mrb[0].mxu0
    %600 = vdwg.mxu0
    %601 = vmatprep.subr.mxu0 0.0
    %v602 = vand.u32 %v59, 4294901760
    %603 = vmatpush1.msra.mxu0 %v602
    %604 = vmatprep.subr.mxu0 0.0
    %v605 = vand.u32 %v60, 4294901760
    %606 = vmatpush1.msra.mxu0 %v605
    %607 = vmatprep.subr.mxu0 0.0
    %v608 = vand.u32 %v61, 4294901760
    %609 = vmatpush1.msra.mxu0 %v608
    %610 = vmatprep.subr.mxu0 0.0
    %v611 = vand.u32 %v62, 4294901760
    %612 = vmatpush1.msra.mxu0 %v611
    %613 = vmatprep.subr.mxu0 0.0
    %614 = vmatpush1.msra.mxu0 0.0
    %615 = vmatprep.subr.mxu0 0.0
    %616 = vmatpush1.msra.mxu0 0.0
    %617 = vmatprep.subr.mxu0 0.0
    %618 = vmatpush1.msra.mxu0 0.0
    %619 = vmatprep.subr.mxu0 0.0
    %620 = vmatpush1.msra.mxu0 0.0
    %621 = vmatprep.subr.mxu0 0.0
    %622 = vmatpush1.msra.mxu0 0.0
    %623 = vmatprep.subr.mxu0 0.0
    %624 = vmatpush1.msra.mxu0 0.0
    %625 = vmatprep.subr.mxu0 0.0
    %626 = vmatpush1.msra.mxu0 0.0
    %627 = vmatprep.subr.mxu0 0.0
    %628 = vmatpush1.msra.mxu0 0.0
    %629 = vmatprep.subr.mxu0 0.0
    %630 = vmatpush1.msra.mxu0 0.0
    %631 = vmatprep.subr.mxu0 0.0
    %632 = vmatpush1.msra.mxu0 0.0
    %633 = vmatprep.subr.mxu0 0.0
    %634 = vmatpush1.msra.mxu0 0.0
    %635 = vmatprep.subr.mxu0 0.0
    %636 = vmatpush1.msra.mxu0 0.0
    %637 = vmatprep.subr.mxu0 0.0
    %638 = vmatpush1.msra.mxu0 0.0
    %639 = vmatprep.subr.mxu0 0.0
    %640 = vmatpush1.msra.mxu0 0.0
    %641 = vmatprep.subr.mxu0 0.0
    %642 = vmatpush1.msra.mxu0 0.0
    %643 = vmatprep.subr.mxu0 0.0
    %644 = vmatpush1.msra.mxu0 0.0
    %645 = vmatprep.subr.mxu0 0.0
    %646 = vmatpush1.msra.mxu0 0.0
    %647 = vmatprep.subr.mxu0 0.0
    %648 = vmatpush1.msra.mxu0 0.0
    %649 = vmatprep.subr.mxu0 0.0
    %650 = vmatpush1.msra.mxu0 0.0
    %651 = vmatprep.subr.mxu0 0.0
    %652 = vmatpush1.msra.mxu0 0.0
    %653 = vmatprep.subr.mxu0 0.0
    %654 = vmatpush1.msra.mxu0 0.0
    %655 = vmatprep.subr.mxu0 0.0
    %656 = vmatpush1.msra.mxu0 0.0
    %657 = vmatprep.subr.mxu0 0.0
    %658 = vmatpush1.msra.mxu0 0.0
    %659 = vmatprep.subr.mxu0 0.0
    %660 = vmatpush1.msra.mxu0 0.0
    %661 = vmatprep.subr.mxu0 0.0
    %662 = vmatpush1.msra.mxu0 0.0
    %663 = vmatprep.subr.mxu0 0.0
    %664 = vmatpush1.msra.mxu0 0.0
    %665 = vmatprep.subr.mxu0 0.0
    %666 = vmatpush1.msra.mxu0 0.0
    %667 = vmatprep.subr.mxu0 0.0
    %668 = vmatpush1.msra.mxu0 0.0
    %669 = vmatprep.mubr.f32.mxu0 0.0
    %v670 = vand.u32 %v69, 4294901760
    %671 = vmatmul.mubr.f32.gmra.mrb[0].mxu0 %v670
    %v672 = vpop.f32.mrb[0].mxu0
    %v673 = vadd.f32 %v580, %v672
    %v674 = vpop.f32.mrb[0].mxu0
    %675 = vmatprep.mubr.f32.mxu0 0.0
    %v676 = vand.u32 %v72, 4294901760
    %677 = vmatmul.mubr.f32.gmra.mrb[0].mxu0 %v676
    %v678 = vpop.f32.mrb[0].mxu0
    %v679 = vadd.f32 %v586, %v678
    %v680 = vpop.f32.mrb[0].mxu0
    %681 = vmatprep.mubr.f32.mxu0 0.0
    %v682 = vand.u32 %v75, 4294901760
    %683 = vmatmul.mubr.f32.gmra.mrb[0].mxu0 %v682
    %v684 = vpop.f32.mrb[0].mxu0
    %v685 = vadd.f32 %v592, %v684
    %v686 = vpop.f32.mrb[0].mxu0
    %687 = vmatprep.mubr.f32.mxu0 0.0
    %v688 = vand.u32 %v78, 4294901760
    %689 = vmatmul.mubr.f32.gmra.mrb[0].mxu0 %v688
    %v690 = vpop.f32.mrb[0].mxu0
    %v691 = vadd.f32 %v598, %v690
    %v692 = vpop.f32.mrb[0].mxu0
    %693 = vdwg.mxu0
    %694 = vst [vmem:[#allocation5] sm:$0xff] %v673
    %695 = vst [vmem:[#allocation5 + $0x8] sm:$0xff] %v679
    %696 = vst [vmem:[#allocation5 + $0x10] sm:$0xff] %v685
    %697 = vst [vmem:[#allocation5 + $0x18] sm:$0xff] %v691
    // Predicated region
    $region18: #{tpu_custom_call.1} parent=1 // pred_check
      _
    $region19: #{tpu_custom_call.1} parent=1 // pred_check_branch
      %699 = sbr.rel (0) target = $region21
    $region20: #{tpu_custom_call.1} parent=1 // pred_region
      %s701 = ssub.s32 512, 512
      %702 = vsyncadd [#allocation4], %s701
      %s703 = sshll.u32 [#allocation5], 4
      %s704 = int_to_ptr.vmem [resolvable:$true] %s703
      %709 = dma.vmem_to_hbm [thread:$0]  %s704, 512, %s3, [#allocation4], 128, 128, 8
    $region21: #{tpu_custom_call.1} parent=1 // pred_fallthru
      _
    // Predicated region
    $region22: #{tpu_custom_call.1} parent=1 // pred_check
      _
    $region23: #{tpu_custom_call.1} parent=1 // pred_check_branch
      %711 = sbr.rel (0) target = $region25
    $region24: #{tpu_custom_call.1} parent=1 // pred_region
      %712 = dma.done [#allocation4], 512
    $region25: #{tpu_custom_call.1} parent=1 // pred_fallthru
      _
    %713 = vsyncpa [#allocation3], 1
    %714 = vsyncpa [#allocation4], 1

</llo_original>
